<compile_context>
chip_gen: v7x
topology: tpu7x:2x2x1
jax: 0.10.0
libtpu: 0.0.40
codegen_flags: <defaults>
</compile_context>

<pallas_src>
import functools

import jax
import jax.numpy as jnp
from jax.experimental import pallas as pl
from jax.experimental.pallas import tpu as pltpu

_MIB = 1 << 20


# ----------------------------------------------------------------------------
# Kernels
# ----------------------------------------------------------------------------

def _mlp_kernel_resident(x_ref, w1_ref, b1_ref, w2_ref, b2_ref, o_ref):
    """Single row-tile grid step, full weights resident in VMEM.

    x_ref:  (TM, D_in)        w1_ref: (D_in, D_hid)   b1_ref: (1, D_hid)
    w2_ref: (D_hid, D_out)    b2_ref: (1, D_out)      o_ref:  (TM, D_out)
    """
    h = jnp.dot(x_ref[...], w1_ref[...], preferred_element_type=jnp.float32)
    # Epilogue dtype is carried by b1's dtype (bf16 on v6e/v7x, f32 on v5e).
    h = h.astype(b1_ref.dtype) + b1_ref[...]
    h = jax.nn.gelu(h, approximate=True)
    y = jnp.dot(h.astype(w2_ref.dtype), w2_ref[...],
                preferred_element_type=jnp.float32)
    o_ref[...] = (y + b2_ref[...]).astype(o_ref.dtype)


def _mlp_kernel_tiled(x_ref, w1_ref, b1_ref, w2_ref, b2_ref, o_ref, acc_ref):
    """Hidden-dim-tiled fallback (large models): f32 VMEM accumulator.

    Grid = (row tiles, hidden tiles); hidden axis is the reduction.
    """
    j = pl.program_id(1)

    @pl.when(j == 0)
    def _():
        acc_ref[...] = jnp.zeros_like(acc_ref)

    h = jnp.dot(x_ref[...], w1_ref[...], preferred_element_type=jnp.float32)
    h = h.astype(b1_ref.dtype) + b1_ref[...]
    h = jax.nn.gelu(h, approximate=True)
    acc_ref[...] += jnp.dot(h.astype(w2_ref.dtype), w2_ref[...],
                            preferred_element_type=jnp.float32)

    @pl.when(j == pl.num_programs(1) - 1)
    def _():
        o_ref[...] = (acc_ref[...] + b2_ref[...]).astype(o_ref.dtype)


# ----------------------------------------------------------------------------
# Wrapper
# ----------------------------------------------------------------------------

def _round_up(v, m):
    return (v + m - 1) // m * m


def _default_epilogue_dtype(compute_dtype):
    """bf16 bias+GELU on v6e/v7x (bf16 VPU/EUP); f32 on v5e / f32 compute."""
    if jnp.dtype(compute_dtype) != jnp.dtype(jnp.bfloat16):
        return jnp.float32
    try:
        kind = jax.devices()[0].device_kind.lower()
    except Exception:  # pragma: no cover
        kind = ""
    return jnp.bfloat16 if ("v6" in kind or "v7" in kind) else jnp.float32


@functools.partial(
    jax.jit,
    static_argnames=("tm", "compute_dtype", "epilogue_dtype",
                     "vmem_budget_bytes", "force_hidden_tiling"))
def _mlp_forward_impl(x, params, *, tm, compute_dtype, epilogue_dtype,
                      vmem_budget_bytes, force_hidden_tiling):
    out_dtype = x.dtype
    *batch_dims, d_in = x.shape
    w1, b1, w2, b2 = params["w1"], params["b1"], params["w2"], params["b2"]
    d_hidden = w1.shape[1]
    d_out = w2.shape[1]

    x2d = x.reshape(-1, d_in)
    n = x2d.shape[0]

    cs = jnp.dtype(compute_dtype).itemsize
    es = jnp.dtype(epilogue_dtype).itemsize
    osz = jnp.dtype(out_dtype).itemsize

    # ---- row tiling (multiple of 8; >=2 tiles when possible for v7x 2-TC) ---
    n8 = _round_up(n, 8)
    tm = _round_up(min(tm, n8), 8)
    if n8 // tm < 2 and n8 >= 16:
        tm = _round_up((n8 + 1) // 2, 8)
    n_pad = _round_up(n, tm)
    if n_pad != n:
        x2d = jnp.pad(x2d, ((0, n_pad - n), (0, 0)))

    # ---- dtype plumbing ------------------------------------------------------
    x2d = x2d.astype(compute_dtype)
    w1c = w1.astype(compute_dtype)
    w2c = w2.astype(compute_dtype)
    b1_2d = b1.reshape(1, d_hidden).astype(epilogue_dtype)
    b2_2d = b2.reshape(1, d_out).astype(jnp.float32)

    # ---- VMEM footprint (double-buffered operands) ---------------------------
    def footprint(th, resident):
        w_bytes = 2 * (d_in * th + th * d_out) * cs
        bias_bytes = 2 * (th * es + d_out * 4)
        xo_bytes = 2 * (tm * d_in * cs + tm * d_out * osz)
        acc_bytes = 0 if resident else tm * d_out * 4
        return w_bytes + bias_bytes + xo_bytes + acc_bytes

    resident = ((not force_hidden_tiling
                 and footprint(d_hidden, True) <= vmem_budget_bytes)
                or d_hidden % 128 != 0)

    cost = pl.CostEstimate(
        flops=2 * n_pad * d_hidden * (d_in + d_out),
        transcendentals=n_pad * d_hidden,
        bytes_accessed=(n_pad * (d_in * cs + d_out * osz)
                        + (d_in * d_hidden + d_hidden * d_out) * cs
                        + (d_hidden + d_out) * 4))

    if resident:
        vmem_bytes = footprint(d_hidden, True)
        out = pl.pallas_call(
            _mlp_kernel_resident,
            out_shape=jax.ShapeDtypeStruct((n_pad, d_out), out_dtype),
            grid_spec=pltpu.PrefetchScalarGridSpec(
                num_scalar_prefetch=0,
                grid=(n_pad // tm,),
                in_specs=[
                    pl.BlockSpec((tm, d_in), lambda i: (i, 0)),          # x rows
                    pl.BlockSpec((d_in, d_hidden), lambda i: (0, 0)),    # w1 (resident)
                    pl.BlockSpec((1, d_hidden), lambda i: (0, 0)),       # b1
                    pl.BlockSpec((d_hidden, d_out), lambda i: (0, 0)),   # w2 (resident)
                    pl.BlockSpec((1, d_out), lambda i: (0, 0)),          # b2
                ],
                out_specs=pl.BlockSpec((tm, d_out), lambda i: (i, 0)),
            ),
            compiler_params=pltpu.CompilerParams(
                dimension_semantics=("parallel",),
                vmem_limit_bytes=int(min(max(vmem_bytes + 4 * _MIB, 32 * _MIB),
                                         64 * _MIB))),
            cost_estimate=cost,
        )(x2d, w1c, b1_2d, w2c, b2_2d)
    else:
        # Largest hidden tile (multiple of 128 dividing d_hidden) that fits.
        divisors = [c for c in range(128, d_hidden, 128) if d_hidden % c == 0]
        divisors = divisors or [d_hidden]
        th = divisors[0]
        for c in reversed(divisors):
            if footprint(c, False) <= vmem_budget_bytes:
                th = c
                break
        vmem_bytes = footprint(th, False)
        out = pl.pallas_call(
            _mlp_kernel_tiled,
            out_shape=jax.ShapeDtypeStruct((n_pad, d_out), out_dtype),
            grid_spec=pltpu.PrefetchScalarGridSpec(
                num_scalar_prefetch=0,
                grid=(n_pad // tm, d_hidden // th),
                in_specs=[
                    pl.BlockSpec((tm, d_in), lambda i, j: (i, 0)),       # x rows
                    pl.BlockSpec((d_in, th), lambda i, j: (0, j)),       # w1 cols
                    pl.BlockSpec((1, th), lambda i, j: (0, j)),          # b1
                    pl.BlockSpec((th, d_out), lambda i, j: (j, 0)),      # w2 rows
                    pl.BlockSpec((1, d_out), lambda i, j: (0, 0)),       # b2
                ],
                out_specs=pl.BlockSpec((tm, d_out), lambda i, j: (i, 0)),
                scratch_shapes=[pltpu.VMEM((tm, d_out), jnp.float32)],
            ),
            compiler_params=pltpu.CompilerParams(
                dimension_semantics=("parallel", "arbitrary"),
                vmem_limit_bytes=int(min(max(vmem_bytes + 4 * _MIB, 32 * _MIB),
                                         64 * _MIB))),
            cost_estimate=cost,
        )(x2d, w1c, b1_2d, w2c, b2_2d)

    out = out[:n]
    return out.reshape(*batch_dims, d_out)


def mlp_forward(x, params, *, tm=512, compute_dtype=jnp.bfloat16,
                epilogue_dtype=None, vmem_budget_bytes=40 * _MIB,
                force_hidden_tiling=False):
    """x: (..., D_in) -> (..., D_out).  drop=0.0 so dropout is identity."""
    if epilogue_dtype is None:
        epilogue_dtype = _default_epilogue_dtype(compute_dtype)
    return _mlp_forward_impl(
        x, params, tm=tm,
        compute_dtype=jnp.dtype(compute_dtype).type,
        epilogue_dtype=jnp.dtype(epilogue_dtype).type,
        vmem_budget_bytes=int(vmem_budget_bytes),
        force_hidden_tiling=bool(force_hidden_tiling))


# ----------------------------------------------------------------------------
# Parameters (PyTorch nn.Linear weights stored pre-transposed: (in, out))
# ----------------------------------------------------------------------------

def make_params(key, d_in, d_hidden, d_out, dtype=jnp.float32):
    k1, k2, k3, k4 = jax.random.split(key, 4)
    w1 = jax.random.normal(k1, (d_in, d_hidden), dtype) * (d_in ** -0.5)
    b1 = jax.random.normal(k2, (d_hidden,), dtype) * 0.02
    w2 = jax.random.normal(k3, (d_hidden, d_out), dtype) * (d_hidden ** -0.5)
    b2 = jax.random.normal(k4, (d_out,), dtype) * 0.02
    return {"w1": w1, "b1": b1, "w2": w2, "b2": b2}


# ----------------------------------------------------------------------------
# Pure-JAX references (for verification)
# ----------------------------------------------------------------------------

def mlp_reference(x, params):
    """Full-f32 reference."""
    h = jnp.einsum("...i,ij->...j", x, params["w1"]) + params["b1"]
    h = jax.nn.gelu(h, approximate=True)
    return jnp.einsum("...i,ij->...j", h, params["w2"]) + params["b2"]


def mlp_reference_quantized(x, params, compute_dtype, epilogue_dtype):
    """Reference mirroring the kernel's cast points (bf16 MXU + epilogue)."""
    w1 = params["w1"].astype(compute_dtype)
    w2 = params["w2"].astype(compute_dtype)
    h = jnp.einsum("...i,ij->...j", x.astype(compute_dtype), w1,
                   preferred_element_type=jnp.float32)
    h = h.astype(epilogue_dtype) + params["b1"].astype(epilogue_dtype)
    h = jax.nn.gelu(h, approximate=True)
    y = jnp.einsum("...i,ij->...j", h.astype(compute_dtype), w2,
                   preferred_element_type=jnp.float32)
    return (y + params["b2"].astype(jnp.float32)).astype(x.dtype)


# ----------------------------------------------------------------------------

if __name__ == "__main__":
    key = jax.random.PRNGKey(0)
    k_x, k_p = jax.random.split(key)

    B, S, D_IN, D_HID = 2, 64, 128, 512        # out_features defaults to in_features
    x = jax.random.normal(k_x, (B, S, D_IN), jnp.float32)
    params = make_params(k_p, D_IN, D_HID, D_IN)

    ref = mlp_reference(x, params)
    ref_q = mlp_reference_quantized(
        x, params, jnp.bfloat16, _default_epilogue_dtype(jnp.bfloat16))

    # Default path: bf16 MXU, resident weights, single-axis row grid.
    out = jax.block_until_ready(mlp_forward(x, params))
    assert out.shape == (B, S, D_IN)
    assert jnp.allclose(out, ref_q, atol=2e-2, rtol=2e-2), (
        float(jnp.max(jnp.abs(out - ref_q))))
    assert jnp.allclose(out, ref, atol=1.2e-1, rtol=1e-1), (
        float(jnp.max(jnp.abs(out - ref))))

    # Hidden-tiled fallback path (large-model form) — forced for coverage.
    out_tiled = jax.block_until_ready(
        mlp_forward(x, params, tm=64, force_hidden_tiling=True))
    assert out_tiled.shape == (B, S, D_IN)
    assert jnp.allclose(out_tiled, ref_q, atol=2e-2, rtol=2e-2), (
        float(jnp.max(jnp.abs(out_tiled - ref_q))))

    # f32 compute path (exception / high-precision mode).
    out_f32 = jax.block_until_ready(
        mlp_forward(x, params, compute_dtype=jnp.float32))
    assert jnp.allclose(out_f32, ref, atol=2e-3, rtol=2e-3), (
        float(jnp.max(jnp.abs(out_f32 - ref))))

    print("KERNEL_OK")
</pallas_src>

<mosaic_0001>
module attributes {stable_mosaic.version = 11 : i64} {
  func.func @_mlp_kernel_resident(%arg0: i32, %arg1: memref<64x128xbf16, #tpu.memory_space<vmem>>, %arg2: memref<128x512xbf16, #tpu.memory_space<vmem>>, %arg3: memref<1x512xf32, #tpu.memory_space<vmem>>, %arg4: memref<512x128xbf16, #tpu.memory_space<vmem>>, %arg5: memref<1x128xf32, #tpu.memory_space<vmem>>, %arg6: memref<64x128xf32, #tpu.memory_space<vmem>>) attributes {dimension_semantics = [#tpu.dimension_semantics<parallel>], iteration_bounds = array<i64: 2>, scalar_prefetch = 0 : i64, scratch_operands = 0 : i64, tpu.core_type = #tpu.core_type<tc>, window_params = [{transform_indices = @transform_0, window_bounds = array<i64: 64, 128>}, {pipeline_mode = #tpu.pipeline_mode<synchronous>, transform_indices = @transform_1, window_bounds = array<i64: 128, 512>}, {pipeline_mode = #tpu.pipeline_mode<synchronous>, transform_indices = @transform_2, window_bounds = array<i64: 1, 512>}, {pipeline_mode = #tpu.pipeline_mode<synchronous>, transform_indices = @transform_3, window_bounds = array<i64: 512, 128>}, {pipeline_mode = #tpu.pipeline_mode<synchronous>, transform_indices = @transform_4, window_bounds = array<i64: 1, 128>}, {transform_indices = @transform_5, window_bounds = array<i64: 64, 128>}]} {
    %c0 = arith.constant 0 : index
    %c0_0 = arith.constant 0 : index
    %0 = vector.load %arg1[%c0, %c0_0] : memref<64x128xbf16, #tpu.memory_space<vmem>>, vector<64x128xbf16>
    %c0_1 = arith.constant 0 : index
    %c0_2 = arith.constant 0 : index
    %1 = vector.load %arg2[%c0_1, %c0_2] : memref<128x512xbf16, #tpu.memory_space<vmem>>, vector<128x512xbf16>
    %cst = arith.constant dense<0.000000e+00> : vector<64x512xf32>
    %2 = tpu.matmul %0, %1, %cst {dimension_numbers = #tpu.dot_dimension_numbers<[1], [0], [0], [1], [0, 0, 1, 1], [], []>} : vector<64x128xbf16>, vector<128x512xbf16>, vector<64x512xf32> -> vector<64x512xf32>
    %c0_3 = arith.constant 0 : index
    %c0_4 = arith.constant 0 : index
    %3 = vector.load %arg3[%c0_3, %c0_4] : memref<1x512xf32, #tpu.memory_space<vmem>>, vector<1x512xf32>
    %4 = vector.broadcast %3 : vector<1x512xf32> to vector<64x512xf32>
    %5 = arith.addf %2, %4 : vector<64x512xf32>
    %6 = arith.mulf %5, %5 : vector<64x512xf32>
    %7 = arith.mulf %5, %6 : vector<64x512xf32>
    %cst_5 = arith.constant 4.471500e-02 : f32
    %8 = vector.broadcast %cst_5 : f32 to vector<64x512xf32>
    %9 = arith.mulf %8, %7 : vector<64x512xf32>
    %10 = arith.addf %5, %9 : vector<64x512xf32>
    %cst_6 = arith.constant 0.797884583 : f32
    %11 = vector.broadcast %cst_6 : f32 to vector<64x512xf32>
    %12 = arith.mulf %11, %10 : vector<64x512xf32>
    %13 = math.tanh %12 : vector<64x512xf32>
    %cst_7 = arith.constant 1.000000e+00 : f32
    %14 = vector.broadcast %cst_7 : f32 to vector<64x512xf32>
    %15 = arith.addf %14, %13 : vector<64x512xf32>
    %cst_8 = arith.constant 5.000000e-01 : f32
    %16 = vector.broadcast %cst_8 : f32 to vector<64x512xf32>
    %17 = arith.mulf %16, %15 : vector<64x512xf32>
    %18 = arith.mulf %5, %17 : vector<64x512xf32>
    %19 = arith.truncf %18 : vector<64x512xf32> to vector<64x512xbf16>
    %c0_9 = arith.constant 0 : index
    %c0_10 = arith.constant 0 : index
    %20 = vector.load %arg4[%c0_9, %c0_10] : memref<512x128xbf16, #tpu.memory_space<vmem>>, vector<512x128xbf16>
    %cst_11 = arith.constant dense<0.000000e+00> : vector<64x128xf32>
    %21 = tpu.matmul %19, %20, %cst_11 {dimension_numbers = #tpu.dot_dimension_numbers<[1], [0], [0], [1], [0, 0, 1, 1], [], []>} : vector<64x512xbf16>, vector<512x128xbf16>, vector<64x128xf32> -> vector<64x128xf32>
    %c0_12 = arith.constant 0 : index
    %c0_13 = arith.constant 0 : index
    %22 = vector.load %arg5[%c0_12, %c0_13] : memref<1x128xf32, #tpu.memory_space<vmem>>, vector<1x128xf32>
    %23 = vector.broadcast %22 : vector<1x128xf32> to vector<64x128xf32>
    %24 = arith.addf %21, %23 : vector<64x128xf32>
    %c0_14 = arith.constant 0 : index
    %c0_15 = arith.constant 0 : index
    %25 = vector.load %arg6[%c0_14, %c0_15] : memref<64x128xf32, #tpu.memory_space<vmem>>, vector<64x128xf32>
    tpu.vector_store %arg6[%c0_14, %c0_15], %24 {strides = array<i32>} : memref<64x128xf32, #tpu.memory_space<vmem>>, vector<64x128xf32>,
    return
  }
  func.func @transform_0(%arg0: i32) -> (i32, i32) {
    %c0_i32 = arith.constant 0 : i32
    %c0_i32_0 = arith.constant 0 : i32
    return %arg0, %c0_i32 : i32, i32
  }
  func.func @transform_1(%arg0: i32) -> (i32, i32) {
    %c0_i32 = arith.constant 0 : i32
    %c0_i32_0 = arith.constant 0 : i32
    %c0_i32_1 = arith.constant 0 : i32
    return %c0_i32, %c0_i32_0 : i32, i32
  }
  func.func @transform_2(%arg0: i32) -> (i32, i32) {
    %c0_i32 = arith.constant 0 : i32
    %c0_i32_0 = arith.constant 0 : i32
    %c0_i32_1 = arith.constant 0 : i32
    return %c0_i32, %c0_i32_0 : i32, i32
  }
  func.func @transform_3(%arg0: i32) -> (i32, i32) {
    %c0_i32 = arith.constant 0 : i32
    %c0_i32_0 = arith.constant 0 : i32
    %c0_i32_1 = arith.constant 0 : i32
    return %c0_i32, %c0_i32_0 : i32, i32
  }
  func.func @transform_4(%arg0: i32) -> (i32, i32) {
    %c0_i32 = arith.constant 0 : i32
    %c0_i32_0 = arith.constant 0 : i32
    %c0_i32_1 = arith.constant 0 : i32
    return %c0_i32, %c0_i32_0 : i32, i32
  }
  func.func @transform_5(%arg0: i32) -> (i32, i32) {
    %c0_i32 = arith.constant 0 : i32
    %c0_i32_0 = arith.constant 0 : i32
    return %arg0, %c0_i32 : i32, i32
  }
}

</mosaic_0001>

<llo_original>
// kernel: _mlp_forward_impl.1
$region0: #{_mlp_forward_impl.1}
  #allocation0 [shape = 'u32[]', space=smem, size = 0x4, offset = 0x4, fixed_abs, tag = 'smem constant byte address 0x4 - core index']
  #allocation1 [shape = 'u32[144,128]{1,0:T(1,128)}', space=vmem, size = 0x12000, scoped, tag = 'internal scratch']
  %s0 = inlined_call_operand.vmem [shape: bf16[128,128], index: 0, kind: input, shape index: {}]
  %s1 = inlined_call_operand.vmem [shape: bf16[128,512], index: 1, kind: input, shape index: {}]
  %s2 = inlined_call_operand.vmem [shape: f32[1,512], index: 2, kind: input, shape index: {}]
  %s3 = inlined_call_operand.vmem [shape: bf16[512,128], index: 3, kind: input, shape index: {}]
  %s4 = inlined_call_operand.vmem [shape: f32[1,128], index: 4, kind: input, shape index: {}]
  %s5 = inlined_call_operand.hbm [shape: f32[128,128], index: 5, kind: output, shape index: {}]
  %s6 = sld [smem:[#allocation0]]
  $region53: #{_mlp_forward_impl.1} parent=0
    _
  %s8 = ssub.s32 1, %s6
  %s9 = scalar_select 0, %s8, %s6
  $region1: #{_mlp_forward_impl.1} parent=0
    #allocation2 [shape = 'u8[65536]{0}', space=vmem, size = 0x10000, scoped, tag = 'output window, operand 0']
    #allocation3 [shape = 's32[2]{0}', space=sflag, size = 0x8, scoped, tag = 'scoped memory for _mlp_forward_impl.1']
    %10 = vsyncpa [#allocation3], 0
    %s11 = scalar_lea.sflag [#allocation3], 1
    %12 = vsyncpa %s11, 0
    loop: start=0, step=1, limit=4
    $region2: #{_mlp_forward_impl.1} parent=1 // loop_pre_header
      _
    $region3: #{_mlp_forward_impl.1} parent=1 // loop_header
      %s14 = sphi 0, %s18
      %p15 = scmp.ge.s32.totalorder %s14, 4
      %s24 = sphi 0, %s26
      %s27 = sphi 0, %s24
      %s28 = sphi 0, %s27
      %s44 = sphi 0, %s28
      %s48 = sphi 0, %s48
      %s50 = sphi 0, %s48
      %s51 = sphi 0, %s50
      %s65 = sphi 0, %s51
      %s69 = sphi 0, %s69
      %s71 = sphi 0, %s69
      %s72 = sphi 0, %s71
      %s86 = sphi 0, %s72
      %s90 = sphi 0, %s90
      %s92 = sphi 0, %s90
      %s93 = sphi 0, %s92
      %s107 = sphi 0, %s93
      %s111 = sphi 0, %s111
      %s113 = sphi 0, %s111
      %s114 = sphi 0, %s113
      %s128 = sphi 0, %s114
      %s134 = sphi 0, %s136
      %s137 = sphi 0, %s134
      %s138 = sphi 0, %s137
      %s154 = sphi 0, %s138
    $region4: #{_mlp_forward_impl.1} parent=1 // loop_header_branch
      %17 = sbr.rel (%p15) target = $region8
    $region5: #{_mlp_forward_impl.1} parent=1 // loop_body
      %s19 = ssub.s32 %s14, 1
      %s20 = ssub.s32 %s14, 2
      %s21 = sadd.s32 %s14, 1
      %s22 = ssub.s32 %s14, %s21
      %p23 = scmp.eq.s32.totalorder %s22, 0
      %s25 = sadd.s32 %s24, 1
      %s26 = scalar_select %p23, %s24, %s25
      %p29 = pneg %p23
      %p30 = scmp.eq.s32.totalorder %s14, 1
      %p31 = por %p29, %p30
      %p32 = scmp.ne.s32.totalorder %s24, %s27
      %p33 = scmp.eq.s32.totalorder %s14, 0
      %p34 = por %p32, %p33
      %p35 = scmp.ne.s32.totalorder %s24, %s27
      %p36 = scmp.eq.s32.totalorder %s19, 1
      %p37 = por %p35, %p36
      %p38 = scmp.ne.s32.totalorder %s27, %s28
      %p39 = scmp.eq.s32.totalorder %s19, 0
      %p40 = por %p38, %p39
      %p41 = scmp.ne.s32.totalorder %s27, %s28
      %p42 = scmp.eq.s32.totalorder %s20, 1
      %p43 = por %p41, %p42
      %p45 = scmp.ne.s32.totalorder %s28, %s44
      %p46 = scmp.eq.s32.totalorder %s20, 0
      %p47 = por %p45, %p46
      %s49 = sadd.s32 %s48, 1
      %p52 = scmp.eq.s32.totalorder %s14, 1
      %p53 = scmp.ne.s32.totalorder %s48, %s50
      %p54 = scmp.eq.s32.totalorder %s14, 0
      %p55 = por %p53, %p54
      %p56 = scmp.ne.s32.totalorder %s48, %s50
      %p57 = scmp.eq.s32.totalorder %s19, 1
      %p58 = por %p56, %p57
      %p59 = scmp.ne.s32.totalorder %s50, %s51
      %p60 = scmp.eq.s32.totalorder %s19, 0
      %p61 = por %p59, %p60
      %p62 = scmp.ne.s32.totalorder %s50, %s51
      %p63 = scmp.eq.s32.totalorder %s20, 1
      %p64 = por %p62, %p63
      %p66 = scmp.ne.s32.totalorder %s51, %s65
      %p67 = scmp.eq.s32.totalorder %s20, 0
      %p68 = por %p66, %p67
      %s70 = sadd.s32 %s69, 1
      %p73 = scmp.eq.s32.totalorder %s14, 1
      %p74 = scmp.ne.s32.totalorder %s69, %s71
      %p75 = scmp.eq.s32.totalorder %s14, 0
      %p76 = por %p74, %p75
      %p77 = scmp.ne.s32.totalorder %s69, %s71
      %p78 = scmp.eq.s32.totalorder %s19, 1
      %p79 = por %p77, %p78
      %p80 = scmp.ne.s32.totalorder %s71, %s72
      %p81 = scmp.eq.s32.totalorder %s19, 0
      %p82 = por %p80, %p81
      %p83 = scmp.ne.s32.totalorder %s71, %s72
      %p84 = scmp.eq.s32.totalorder %s20, 1
      %p85 = por %p83, %p84
      %p87 = scmp.ne.s32.totalorder %s72, %s86
      %p88 = scmp.eq.s32.totalorder %s20, 0
      %p89 = por %p87, %p88
      %s91 = sadd.s32 %s90, 1
      %p94 = scmp.eq.s32.totalorder %s14, 1
      %p95 = scmp.ne.s32.totalorder %s90, %s92
      %p96 = scmp.eq.s32.totalorder %s14, 0
      %p97 = por %p95, %p96
      %p98 = scmp.ne.s32.totalorder %s90, %s92
      %p99 = scmp.eq.s32.totalorder %s19, 1
      %p100 = por %p98, %p99
      %p101 = scmp.ne.s32.totalorder %s92, %s93
      %p102 = scmp.eq.s32.totalorder %s19, 0
      %p103 = por %p101, %p102
      %p104 = scmp.ne.s32.totalorder %s92, %s93
      %p105 = scmp.eq.s32.totalorder %s20, 1
      %p106 = por %p104, %p105
      %p108 = scmp.ne.s32.totalorder %s93, %s107
      %p109 = scmp.eq.s32.totalorder %s20, 0
      %p110 = por %p108, %p109
      %s112 = sadd.s32 %s111, 1
      %p115 = scmp.eq.s32.totalorder %s14, 1
      %p116 = scmp.ne.s32.totalorder %s111, %s113
      %p117 = scmp.eq.s32.totalorder %s14, 0
      %p118 = por %p116, %p117
      %p119 = scmp.ne.s32.totalorder %s111, %s113
      %p120 = scmp.eq.s32.totalorder %s19, 1
      %p121 = por %p119, %p120
      %p122 = scmp.ne.s32.totalorder %s113, %s114
      %p123 = scmp.eq.s32.totalorder %s19, 0
      %p124 = por %p122, %p123
      %p125 = scmp.ne.s32.totalorder %s113, %s114
      %p126 = scmp.eq.s32.totalorder %s20, 1
      %p127 = por %p125, %p126
      %p129 = scmp.ne.s32.totalorder %s114, %s128
      %p130 = scmp.eq.s32.totalorder %s20, 0
      %p131 = por %p129, %p130
      %s132 = ssub.s32 %s14, %s21
      %p133 = scmp.eq.s32.totalorder %s132, 0
      %s135 = sadd.s32 %s134, 1
      %s136 = scalar_select %p133, %s134, %s135
      %p139 = pneg %p133
      %p140 = scmp.eq.s32.totalorder %s14, 1
      %p141 = por %p139, %p140
      %p142 = scmp.ne.s32.totalorder %s134, %s137
      %p143 = scmp.eq.s32.totalorder %s14, 0
      %p144 = por %p142, %p143
      %p145 = scmp.ne.s32.totalorder %s134, %s137
      %p146 = scmp.eq.s32.totalorder %s19, 1
      %p147 = por %p145, %p146
      %p148 = scmp.ne.s32.totalorder %s137, %s138
      %p149 = scmp.eq.s32.totalorder %s19, 0
      %p150 = por %p148, %p149
      %p151 = scmp.ne.s32.totalorder %s137, %s138
      %p152 = scmp.eq.s32.totalorder %s20, 1
      %p153 = por %p151, %p152
      %p155 = scmp.ne.s32.totalorder %s138, %s154
      %p156 = scmp.eq.s32.totalorder %s20, 0
      %p157 = por %p155, %p156
      %p158 = scmp.le.s32.totalorder 1, %s14
      %p159 = scmp.lt.s32.totalorder %s14, 3
      %p160 = pnand %p158, %p159
      %p161 = pneg %p160
      // Predicated region
      $region9: #{_mlp_forward_impl.1} parent=5 // pred_check
        _
      $region10: #{_mlp_forward_impl.1} parent=5 // pred_check_branch
        %163 = sbr.rel (%p160) target = $region12
      $region11: #{_mlp_forward_impl.1} parent=5 // pred_region
        %s164 = ssub.s32 %s14, 1
        // Predicated region
        $region13: #{_mlp_forward_impl.1} parent=11 // pred_check
          %p165 = pneg %p61
        $region14: #{_mlp_forward_impl.1} parent=11 // pred_check_branch
          %167 = sbr.rel (%p165) target = $region16
        $region15: #{_mlp_forward_impl.1} parent=11 // pred_region
          _
        $region16: #{_mlp_forward_impl.1} parent=11 // pred_fallthru
          _
        // Predicated region
        $region17: #{_mlp_forward_impl.1} parent=11 // pred_check
          %p168 = pneg %p82
        $region18: #{_mlp_forward_impl.1} parent=11 // pred_check_branch
          %170 = sbr.rel (%p168) target = $region20
        $region19: #{_mlp_forward_impl.1} parent=11 // pred_region
          _
        $region20: #{_mlp_forward_impl.1} parent=11 // pred_fallthru
          _
        // Predicated region
        $region21: #{_mlp_forward_impl.1} parent=11 // pred_check
          %p171 = pneg %p103
        $region22: #{_mlp_forward_impl.1} parent=11 // pred_check_branch
          %173 = sbr.rel (%p171) target = $region24
        $region23: #{_mlp_forward_impl.1} parent=11 // pred_region
          _
        $region24: #{_mlp_forward_impl.1} parent=11 // pred_fallthru
          _
        // Predicated region
        $region25: #{_mlp_forward_impl.1} parent=11 // pred_check
          %p174 = pneg %p124
        $region26: #{_mlp_forward_impl.1} parent=11 // pred_check_branch
          %176 = sbr.rel (%p174) target = $region28
        $region27: #{_mlp_forward_impl.1} parent=11 // pred_region
          _
        $region28: #{_mlp_forward_impl.1} parent=11 // pred_fallthru
          _
      $region12: #{_mlp_forward_impl.1} parent=5 // pred_fallthru
        _
      %p177 = scmp.lt.s32.totalorder %s14, 2
      // Predicated region
      $region29: #{_mlp_forward_impl.1} parent=5 // pred_check
        %p178 = pneg %p177
      $region30: #{_mlp_forward_impl.1} parent=5 // pred_check_branch
        %180 = sbr.rel (%p178) target = $region32
      $region31: #{_mlp_forward_impl.1} parent=5 // pred_region
        // Predicated region
        $region33: #{_mlp_forward_impl.1} parent=31 // pred_check
          %p181 = pneg %p34
        $region34: #{_mlp_forward_impl.1} parent=31 // pred_check_branch
          %183 = sbr.rel (%p181) target = $region36
        $region35: #{_mlp_forward_impl.1} parent=31 // pred_region
          %s184 = smul.u32 8, %s14
          %p185 = scmp.lt.s32.totalorder %s184, 15
          %s186 = scalar_select %p185, %s184, 15
          %s187 = smul.addr %s186, 4
          %s188 = scalar_lea.vmem %s0, %s187
          %s189 = smul.u32 8, %s14
        $region36: #{_mlp_forward_impl.1} parent=31 // pred_fallthru
          _
      $region32: #{_mlp_forward_impl.1} parent=5 // pred_fallthru
        _
      %p190 = scmp.le.s32.totalorder 1, %s14
      %p191 = scmp.lt.s32.totalorder %s14, 3
      %p192 = pnand %p190, %p191
      %p193 = pneg %p192
      // Predicated region
      $region37: #{_mlp_forward_impl.1} parent=5 // pred_check
        _
      $region38: #{_mlp_forward_impl.1} parent=5 // pred_check_branch
        %195 = sbr.rel (%p192) target = $region40
      $region39: #{_mlp_forward_impl.1} parent=5 // pred_region
        %s196 = ssub.s32 %s14, 1
        %s197 = smul.u32 8, %s19
        %p198 = scmp.lt.s32.totalorder %s197, 15
        %s199 = scalar_select %p198, %s197, 15
        %s200 = smul.addr %s199, 4
        %s201 = scalar_lea.vmem %s0, %s200
        %p202 = pneg %p40
        %p203 = pneg %p37
        %p204 = pneg %p61
        %p205 = pneg %p58
        %p206 = pneg %p82
        %p207 = pneg %p79
        %p208 = pneg %p103
        %p209 = pneg %p100
        %p210 = pneg %p124
        %p211 = pneg %p121
        %p212 = pneg %p150
        %p213 = pneg %p147
        %s214 = sand.u32 %s137, 1
        %s215 = scalar_lea.sflag [#allocation3], %s214
        %s216 = sand.u32 %s137, 1
        %s217 = smul.addr %s216, 64
        %s218 = scalar_lea.vmem [#allocation2], %s217
        %s219 = smul.u32 8, %s19
        %p220 = scmp.lt.s32.totalorder %s219, 15
        %s221 = scalar_select %p220, %s219, 15
        %s222 = smul.addr %s221, 4
        %s223 = scalar_lea.vmem %s0, %s222
        %s224 = smul.u32 8, %s19
        %s225 = smul.u32 8, %s19
        %v227 = vld [vmem:[%s223] sm:$0xf]
        %v228 = vld [vmem:[%s223 + $0x4] sm:$0xf]
        %v229 = vld [vmem:[%s223 + $0x8] sm:$0xf]
        %v230 = vld [vmem:[%s223 + $0xc] sm:$0xf]
        %v231 = vld [vmem:[%s223 + $0x10] sm:$0xf]
        %v232 = vld [vmem:[%s223 + $0x14] sm:$0xf]
        %v233 = vld [vmem:[%s223 + $0x18] sm:$0xf]
        %v234 = vld [vmem:[%s223 + $0x1c] sm:$0xf]
        %v235 = vld [vmem:[%s1] sm:$0xff]
        %v236 = vld [vmem:[%s1 + $0x8] sm:$0xff]
        %v237 = vld [vmem:[%s1 + $0x10] sm:$0xff]
        %v238 = vld [vmem:[%s1 + $0x18] sm:$0xff]
        %v239 = vld [vmem:[%s1 + $0x20] sm:$0xff]
        %v240 = vld [vmem:[%s1 + $0x28] sm:$0xff]
        %v241 = vld [vmem:[%s1 + $0x30] sm:$0xff]
        %v242 = vld [vmem:[%s1 + $0x38] sm:$0xff]
        %v243 = vld [vmem:[%s1 + $0x40] sm:$0xff]
        %v244 = vld [vmem:[%s1 + $0x48] sm:$0xff]
        %v245 = vld [vmem:[%s1 + $0x50] sm:$0xff]
        %v246 = vld [vmem:[%s1 + $0x58] sm:$0xff]
        %v247 = vld [vmem:[%s1 + $0x60] sm:$0xff]
        %v248 = vld [vmem:[%s1 + $0x68] sm:$0xff]
        %v249 = vld [vmem:[%s1 + $0x70] sm:$0xff]
        %v250 = vld [vmem:[%s1 + $0x78] sm:$0xff]
        %v251 = vld [vmem:[%s1 + $0x80] sm:$0xff]
        %v252 = vld [vmem:[%s1 + $0x88] sm:$0xff]
        %v253 = vld [vmem:[%s1 + $0x90] sm:$0xff]
        %v254 = vld [vmem:[%s1 + $0x98] sm:$0xff]
        %v255 = vld [vmem:[%s1 + $0xa0] sm:$0xff]
        %v256 = vld [vmem:[%s1 + $0xa8] sm:$0xff]
        %v257 = vld [vmem:[%s1 + $0xb0] sm:$0xff]
        %v258 = vld [vmem:[%s1 + $0xb8] sm:$0xff]
        %v259 = vld [vmem:[%s1 + $0xc0] sm:$0xff]
        %v260 = vld [vmem:[%s1 + $0xc8] sm:$0xff]
        %v261 = vld [vmem:[%s1 + $0xd0] sm:$0xff]
        %v262 = vld [vmem:[%s1 + $0xd8] sm:$0xff]
        %v263 = vld [vmem:[%s1 + $0xe0] sm:$0xff]
        %v264 = vld [vmem:[%s1 + $0xe8] sm:$0xff]
        %v265 = vld [vmem:[%s1 + $0xf0] sm:$0xff]
        %v266 = vld [vmem:[%s1 + $0xf8] sm:$0xff]
        %v267 = vld [vmem:[%s2] sm:$0xf]
        %v269 = vlaneseq
        %v270 = vshrl.u32 %v269, 7
        %v271 = vsub.s32 0, %v270
        %v272 = vrot.slane %v267, %v271
        %v273 = vlaneseq
        %v274 = vshrl.u32 %v273, 7
        %v275 = vsub.s32 1, %v274
        %v276 = vrot.slane %v267, %v275
        %v277 = vlaneseq
        %v278 = vshrl.u32 %v277, 7
        %v279 = vsub.s32 2, %v278
        %v280 = vrot.slane %v267, %v279
        %v281 = vlaneseq
        %v282 = vshrl.u32 %v281, 7
        %v283 = vsub.s32 3, %v282
        %v284 = vrot.slane %v267, %v283
        %v297 = vunpack.c.l.b16 %v227
        %v298 = vunpack.c.l.b16 %v228
        %v299 = vunpack.c.l.b16 %v229
        %v300 = vunpack.c.l.b16 %v230
        %v301 = vunpack.c.l.b16 %v231
        %v302 = vunpack.c.l.b16 %v232
        %v303 = vunpack.c.l.b16 %v233
        %v304 = vunpack.c.l.b16 %v234
        %v305 = vpack.c.b16 %v298, %v297
        %v306 = vpack.c.b16 %v300, %v299
        %v307 = vpack.c.b16 %v302, %v301
        %v308 = vpack.c.b16 %v304, %v303
        %v345 = vunpack.c.l.b16 %v235
        %v346 = vunpack.c.h.b16 %v235
        %v347 = vunpack.c.l.b16 %v236
        %v348 = vunpack.c.h.b16 %v236
        %v349 = vunpack.c.l.b16 %v237
        %v350 = vunpack.c.h.b16 %v237
        %v351 = vunpack.c.l.b16 %v238
        %v352 = vunpack.c.h.b16 %v238
        %v353 = vunpack.c.l.b16 %v239
        %v354 = vunpack.c.h.b16 %v239
        %v355 = vunpack.c.l.b16 %v240
        %v356 = vunpack.c.h.b16 %v240
        %v357 = vunpack.c.l.b16 %v241
        %v358 = vunpack.c.h.b16 %v241
        %v359 = vunpack.c.l.b16 %v242
        %v360 = vunpack.c.h.b16 %v242
        %v361 = vunpack.c.l.b16 %v243
        %v362 = vunpack.c.h.b16 %v243
        %v363 = vunpack.c.l.b16 %v244
        %v364 = vunpack.c.h.b16 %v244
        %v365 = vunpack.c.l.b16 %v245
        %v366 = vunpack.c.h.b16 %v245
        %v367 = vunpack.c.l.b16 %v246
        %v368 = vunpack.c.h.b16 %v246
        %v369 = vunpack.c.l.b16 %v247
        %v370 = vunpack.c.h.b16 %v247
        %v371 = vunpack.c.l.b16 %v248
        %v372 = vunpack.c.h.b16 %v248
        %v373 = vunpack.c.l.b16 %v249
        %v374 = vunpack.c.h.b16 %v249
        %v375 = vunpack.c.l.b16 %v250
        %v376 = vunpack.c.h.b16 %v250
        %v377 = vunpack.c.l.b16 %v251
        %v378 = vunpack.c.h.b16 %v251
        %v379 = vunpack.c.l.b16 %v252
        %v380 = vunpack.c.h.b16 %v252
        %v381 = vunpack.c.l.b16 %v253
        %v382 = vunpack.c.h.b16 %v253
        %v383 = vunpack.c.l.b16 %v254
        %v384 = vunpack.c.h.b16 %v254
        %v385 = vunpack.c.l.b16 %v255
        %v386 = vunpack.c.h.b16 %v255
        %v387 = vunpack.c.l.b16 %v256
        %v388 = vunpack.c.h.b16 %v256
        %v389 = vunpack.c.l.b16 %v257
        %v390 = vunpack.c.h.b16 %v257
        %v391 = vunpack.c.l.b16 %v258
        %v392 = vunpack.c.h.b16 %v258
        %v393 = vunpack.c.l.b16 %v259
        %v394 = vunpack.c.h.b16 %v259
        %v395 = vunpack.c.l.b16 %v260
        %v396 = vunpack.c.h.b16 %v260
        %v397 = vunpack.c.l.b16 %v261
        %v398 = vunpack.c.h.b16 %v261
        %v399 = vunpack.c.l.b16 %v262
        %v400 = vunpack.c.h.b16 %v262
        %v401 = vunpack.c.l.b16 %v263
        %v402 = vunpack.c.h.b16 %v263
        %v403 = vunpack.c.l.b16 %v264
        %v404 = vunpack.c.h.b16 %v264
        %v405 = vunpack.c.l.b16 %v265
        %v406 = vunpack.c.h.b16 %v265
        %v407 = vunpack.c.l.b16 %v266
        %v408 = vunpack.c.h.b16 %v266
        %v409 = vpack.c.b16 %v349, %v345
        %v410 = vpack.c.b16 %v350, %v346
        %v411 = vpack.c.b16 %v351, %v347
        %v412 = vpack.c.b16 %v352, %v348
        %v413 = vpack.c.b16 %v357, %v353
        %v414 = vpack.c.b16 %v358, %v354
        %v415 = vpack.c.b16 %v359, %v355
        %v416 = vpack.c.b16 %v360, %v356
        %v417 = vpack.c.b16 %v365, %v361
        %v418 = vpack.c.b16 %v366, %v362
        %v419 = vpack.c.b16 %v367, %v363
        %v420 = vpack.c.b16 %v368, %v364
        %v421 = vpack.c.b16 %v373, %v369
        %v422 = vpack.c.b16 %v374, %v370
        %v423 = vpack.c.b16 %v375, %v371
        %v424 = vpack.c.b16 %v376, %v372
        %v425 = vpack.c.b16 %v381, %v377
        %v426 = vpack.c.b16 %v382, %v378
        %v427 = vpack.c.b16 %v383, %v379
        %v428 = vpack.c.b16 %v384, %v380
        %v429 = vpack.c.b16 %v389, %v385
        %v430 = vpack.c.b16 %v390, %v386
        %v431 = vpack.c.b16 %v391, %v387
        %v432 = vpack.c.b16 %v392, %v388
        %v433 = vpack.c.b16 %v397, %v393
        %v434 = vpack.c.b16 %v398, %v394
        %v435 = vpack.c.b16 %v399, %v395
        %v436 = vpack.c.b16 %v400, %v396
        %v437 = vpack.c.b16 %v405, %v401
        %v438 = vpack.c.b16 %v406, %v402
        %v439 = vpack.c.b16 %v407, %v403
        %v440 = vpack.c.b16 %v408, %v404
        %473 = vmatprep.subr.bf16.mxu0 %v410
        %474 = vmatpush1.bf16.msra.mxu0 %v409
        %475 = vmatprep.subr.bf16.mxu0 %v414
        %476 = vmatpush1.bf16.msra.mxu0 %v413
        %477 = vmatprep.subr.bf16.mxu0 %v418
        %478 = vmatpush1.bf16.msra.mxu0 %v417
        %479 = vmatprep.subr.bf16.mxu0 %v422
        %480 = vmatpush1.bf16.msra.mxu0 %v421
        %481 = vmatprep.subr.bf16.mxu0 %v426
        %482 = vmatpush1.bf16.msra.mxu0 %v425
        %483 = vmatprep.subr.bf16.mxu0 %v430
        %484 = vmatpush1.bf16.msra.mxu0 %v429
        %485 = vmatprep.subr.bf16.mxu0 %v434
        %486 = vmatpush1.bf16.msra.mxu0 %v433
        %487 = vmatprep.subr.bf16.mxu0 %v438
        %488 = vmatpush1.bf16.msra.mxu0 %v437
        %489 = vmatprep.subr.bf16.mxu0 0
        %490 = vmatpush1.bf16.msra.mxu0 0
        %491 = vmatprep.subr.bf16.mxu0 0
        %492 = vmatpush1.bf16.msra.mxu0 0
        %493 = vmatprep.subr.bf16.mxu0 0
        %494 = vmatpush1.bf16.msra.mxu0 0
        %495 = vmatprep.subr.bf16.mxu0 0
        %496 = vmatpush1.bf16.msra.mxu0 0
        %497 = vmatprep.subr.bf16.mxu0 0
        %498 = vmatpush1.bf16.msra.mxu0 0
        %499 = vmatprep.subr.bf16.mxu0 0
        %500 = vmatpush1.bf16.msra.mxu0 0
        %501 = vmatprep.subr.bf16.mxu0 0
        %502 = vmatpush1.bf16.msra.mxu0 0
        %503 = vmatprep.subr.bf16.mxu0 0
        %504 = vmatpush1.bf16.msra.mxu0 0
        %505 = vmatprep.mubr.bf16.mxu0 0
        %506 = vmatmul.mubr.bf16.gmra.mrb[0].mxu0 %v305
        %v507 = vpop.f32.mrb[0].mxu0
        %v508 = vadd.f32 %v272, %v507
        %v509 = vpop.f32.mrb[0].mxu0
        %v510 = vadd.f32 %v276, %v509
        %v511 = vpop.f32.mrb[0].mxu0
        %v512 = vadd.f32 %v272, %v511
        %v513 = vpop.f32.mrb[0].mxu0
        %v514 = vadd.f32 %v276, %v513
        %515 = vmatprep.mubr.bf16.mxu0 0
        %516 = vmatmul.mubr.bf16.gmra.mrb[0].mxu0 %v306
        %v517 = vpop.f32.mrb[0].mxu0
        %v518 = vadd.f32 %v272, %v517
        %v519 = vpop.f32.mrb[0].mxu0
        %v520 = vadd.f32 %v276, %v519
        %v521 = vpop.f32.mrb[0].mxu0
        %v522 = vadd.f32 %v272, %v521
        %v523 = vpop.f32.mrb[0].mxu0
        %v524 = vadd.f32 %v276, %v523
        %525 = vmatprep.mubr.bf16.mxu0 0
        %526 = vmatmul.mubr.bf16.gmra.mrb[0].mxu0 %v307
        %v527 = vpop.f32.mrb[0].mxu0
        %v528 = vadd.f32 %v272, %v527
        %v529 = vpop.f32.mrb[0].mxu0
        %v530 = vadd.f32 %v276, %v529
        %v531 = vpop.f32.mrb[0].mxu0
        %v532 = vadd.f32 %v272, %v531
        %v533 = vpop.f32.mrb[0].mxu0
        %v534 = vadd.f32 %v276, %v533
        %535 = vmatprep.mubr.bf16.mxu0 0
        %536 = vmatmul.mubr.bf16.gmra.mrb[0].mxu0 %v308
        %v537 = vpop.f32.mrb[0].mxu0
        %v538 = vadd.f32 %v272, %v537
        %v539 = vpop.f32.mrb[0].mxu0
        %v540 = vadd.f32 %v276, %v539
        %v541 = vpop.f32.mrb[0].mxu0
        %v542 = vadd.f32 %v272, %v541
        %v543 = vpop.f32.mrb[0].mxu0
        %v544 = vadd.f32 %v276, %v543
        %545 = vdwg.mxu0
        %546 = vmatprep.subr.bf16.mxu0 %v412
        %547 = vmatpush1.bf16.msra.mxu0 %v411
        %548 = vmatprep.subr.bf16.mxu0 %v416
        %549 = vmatpush1.bf16.msra.mxu0 %v415
        %550 = vmatprep.subr.bf16.mxu0 %v420
        %551 = vmatpush1.bf16.msra.mxu0 %v419
        %552 = vmatprep.subr.bf16.mxu0 %v424
        %553 = vmatpush1.bf16.msra.mxu0 %v423
        %554 = vmatprep.subr.bf16.mxu0 %v428
        %555 = vmatpush1.bf16.msra.mxu0 %v427
        %556 = vmatprep.subr.bf16.mxu0 %v432
        %557 = vmatpush1.bf16.msra.mxu0 %v431
        %558 = vmatprep.subr.bf16.mxu0 %v436
        %559 = vmatpush1.bf16.msra.mxu0 %v435
        %560 = vmatprep.subr.bf16.mxu0 %v440
        %561 = vmatpush1.bf16.msra.mxu0 %v439
        %562 = vmatprep.subr.bf16.mxu0 0
        %563 = vmatpush1.bf16.msra.mxu0 0
        %564 = vmatprep.subr.bf16.mxu0 0
        %565 = vmatpush1.bf16.msra.mxu0 0
        %566 = vmatprep.subr.bf16.mxu0 0
        %567 = vmatpush1.bf16.msra.mxu0 0
        %568 = vmatprep.subr.bf16.mxu0 0
        %569 = vmatpush1.bf16.msra.mxu0 0
        %570 = vmatprep.subr.bf16.mxu0 0
        %571 = vmatpush1.bf16.msra.mxu0 0
        %572 = vmatprep.subr.bf16.mxu0 0
        %573 = vmatpush1.bf16.msra.mxu0 0
        %574 = vmatprep.subr.bf16.mxu0 0
        %575 = vmatpush1.bf16.msra.mxu0 0
        %576 = vmatprep.subr.bf16.mxu0 0
        %577 = vmatpush1.bf16.msra.mxu0 0
        %578 = vmatprep.mubr.bf16.mxu0 0
        %579 = vmatmul.mubr.bf16.gmra.mrb[0].mxu0 %v305
        %v580 = vpop.f32.mrb[0].mxu0
        %v581 = vadd.f32 %v280, %v580
        %v582 = vpop.f32.mrb[0].mxu0
        %v583 = vadd.f32 %v284, %v582
        %v584 = vpop.f32.mrb[0].mxu0
        %v585 = vadd.f32 %v280, %v584
        %v586 = vpop.f32.mrb[0].mxu0
        %v587 = vadd.f32 %v284, %v586
        %588 = vmatprep.mubr.bf16.mxu0 0
        %589 = vmatmul.mubr.bf16.gmra.mrb[0].mxu0 %v306
        %v590 = vpop.f32.mrb[0].mxu0
        %v591 = vadd.f32 %v280, %v590
        %v592 = vpop.f32.mrb[0].mxu0
        %v593 = vadd.f32 %v284, %v592
        %v594 = vpop.f32.mrb[0].mxu0
        %v595 = vadd.f32 %v280, %v594
        %v596 = vpop.f32.mrb[0].mxu0
        %v597 = vadd.f32 %v284, %v596
        %598 = vmatprep.mubr.bf16.mxu0 0
        %599 = vmatmul.mubr.bf16.gmra.mrb[0].mxu0 %v307
        %v600 = vpop.f32.mrb[0].mxu0
        %v601 = vadd.f32 %v280, %v600
        %v602 = vpop.f32.mrb[0].mxu0
        %v603 = vadd.f32 %v284, %v602
        %v604 = vpop.f32.mrb[0].mxu0
        %v605 = vadd.f32 %v280, %v604
        %v606 = vpop.f32.mrb[0].mxu0
        %v607 = vadd.f32 %v284, %v606
        %608 = vmatprep.mubr.bf16.mxu0 0
        %609 = vmatmul.mubr.bf16.gmra.mrb[0].mxu0 %v308
        %v610 = vpop.f32.mrb[0].mxu0
        %v611 = vadd.f32 %v280, %v610
        %v612 = vpop.f32.mrb[0].mxu0
        %v613 = vadd.f32 %v284, %v612
        %v614 = vpop.f32.mrb[0].mxu0
        %v615 = vadd.f32 %v280, %v614
        %v616 = vpop.f32.mrb[0].mxu0
        %v617 = vadd.f32 %v284, %v616
        %618 = vdwg.mxu0
        %v619 = vmul.f32 %v508, %v508
        %v620 = vmul.f32 %v510, %v510
        %v621 = vmul.f32 %v581, %v581
        %v622 = vmul.f32 %v583, %v583
        %v623 = vmul.f32 %v512, %v512
        %v624 = vmul.f32 %v514, %v514
        %v625 = vmul.f32 %v585, %v585
        %v626 = vmul.f32 %v587, %v587
        %v627 = vmul.f32 %v518, %v518
        %v628 = vmul.f32 %v520, %v520
        %v629 = vmul.f32 %v591, %v591
        %v630 = vmul.f32 %v593, %v593
        %v631 = vmul.f32 %v522, %v522
        %v632 = vmul.f32 %v524, %v524
        %v633 = vmul.f32 %v595, %v595
        %v634 = vmul.f32 %v597, %v597
        %v635 = vmul.f32 %v528, %v528
        %v636 = vmul.f32 %v530, %v530
        %v637 = vmul.f32 %v601, %v601
        %v638 = vmul.f32 %v603, %v603
        %v639 = vmul.f32 %v532, %v532
        %v640 = vmul.f32 %v534, %v534
        %v641 = vmul.f32 %v605, %v605
        %v642 = vmul.f32 %v607, %v607
        %v643 = vmul.f32 %v538, %v538
        %v644 = vmul.f32 %v540, %v540
        %v645 = vmul.f32 %v611, %v611
        %v646 = vmul.f32 %v613, %v613
        %v647 = vmul.f32 %v542, %v542
        %v648 = vmul.f32 %v544, %v544
        %v649 = vmul.f32 %v615, %v615
        %v650 = vmul.f32 %v617, %v617
        %v651 = vmul.f32 %v508, %v619
        %v652 = vmul.f32 %v510, %v620
        %v653 = vmul.f32 %v581, %v621
        %v654 = vmul.f32 %v583, %v622
        %v655 = vmul.f32 %v512, %v623
        %v656 = vmul.f32 %v514, %v624
        %v657 = vmul.f32 %v585, %v625
        %v658 = vmul.f32 %v587, %v626
        %v659 = vmul.f32 %v518, %v627
        %v660 = vmul.f32 %v520, %v628
        %v661 = vmul.f32 %v591, %v629
        %v662 = vmul.f32 %v593, %v630
        %v663 = vmul.f32 %v522, %v631
        %v664 = vmul.f32 %v524, %v632
        %v665 = vmul.f32 %v595, %v633
        %v666 = vmul.f32 %v597, %v634
        %v667 = vmul.f32 %v528, %v635
        %v668 = vmul.f32 %v530, %v636
        %v669 = vmul.f32 %v601, %v637
        %v670 = vmul.f32 %v603, %v638
        %v671 = vmul.f32 %v532, %v639
        %v672 = vmul.f32 %v534, %v640
        %v673 = vmul.f32 %v605, %v641
        %v674 = vmul.f32 %v607, %v642
        %v675 = vmul.f32 %v538, %v643
        %v676 = vmul.f32 %v540, %v644
        %v677 = vmul.f32 %v611, %v645
        %v678 = vmul.f32 %v613, %v646
        %v679 = vmul.f32 %v542, %v647
        %v680 = vmul.f32 %v544, %v648
        %v681 = vmul.f32 %v615, %v649
        %v682 = vmul.f32 %v617, %v650
        %v683 = vmul.f32 %v651, 0.044715
        %v684 = vmul.f32 %v652, 0.044715
        %v685 = vmul.f32 %v653, 0.044715
        %v686 = vmul.f32 %v654, 0.044715
        %v687 = vmul.f32 %v655, 0.044715
        %v688 = vmul.f32 %v656, 0.044715
        %v689 = vmul.f32 %v657, 0.044715
        %v690 = vmul.f32 %v658, 0.044715
        %v691 = vmul.f32 %v659, 0.044715
        %v692 = vmul.f32 %v660, 0.044715
        %v693 = vmul.f32 %v661, 0.044715
        %v694 = vmul.f32 %v662, 0.044715
        %v695 = vmul.f32 %v663, 0.044715
        %v696 = vmul.f32 %v664, 0.044715
        %v697 = vmul.f32 %v665, 0.044715
        %v698 = vmul.f32 %v666, 0.044715
        %v699 = vmul.f32 %v667, 0.044715
        %v700 = vmul.f32 %v668, 0.044715
        %v701 = vmul.f32 %v669, 0.044715
        %v702 = vmul.f32 %v670, 0.044715
        %v703 = vmul.f32 %v671, 0.044715
        %v704 = vmul.f32 %v672, 0.044715
        %v705 = vmul.f32 %v673, 0.044715
        %v706 = vmul.f32 %v674, 0.044715
        %v707 = vmul.f32 %v675, 0.044715
        %v708 = vmul.f32 %v676, 0.044715
        %v709 = vmul.f32 %v677, 0.044715
        %v710 = vmul.f32 %v678, 0.044715
        %v711 = vmul.f32 %v679, 0.044715
        %v712 = vmul.f32 %v680, 0.044715
        %v713 = vmul.f32 %v681, 0.044715
        %v714 = vmul.f32 %v682, 0.044715
        %v715 = vadd.f32 %v508, %v683
        %v716 = vadd.f32 %v510, %v684
        %v717 = vadd.f32 %v581, %v685
        %v718 = vadd.f32 %v583, %v686
        %v719 = vadd.f32 %v512, %v687
        %v720 = vadd.f32 %v514, %v688
        %v721 = vadd.f32 %v585, %v689
        %v722 = vadd.f32 %v587, %v690
        %v723 = vadd.f32 %v518, %v691
        %v724 = vadd.f32 %v520, %v692
        %v725 = vadd.f32 %v591, %v693
        %v726 = vadd.f32 %v593, %v694
        %v727 = vadd.f32 %v522, %v695
        %v728 = vadd.f32 %v524, %v696
        %v729 = vadd.f32 %v595, %v697
        %v730 = vadd.f32 %v597, %v698
        %v731 = vadd.f32 %v528, %v699
        %v732 = vadd.f32 %v530, %v700
        %v733 = vadd.f32 %v601, %v701
        %v734 = vadd.f32 %v603, %v702
        %v735 = vadd.f32 %v532, %v703
        %v736 = vadd.f32 %v534, %v704
        %v737 = vadd.f32 %v605, %v705
        %v738 = vadd.f32 %v607, %v706
        %v739 = vadd.f32 %v538, %v707
        %v740 = vadd.f32 %v540, %v708
        %v741 = vadd.f32 %v611, %v709
        %v742 = vadd.f32 %v613, %v710
        %v743 = vadd.f32 %v542, %v711
        %v744 = vadd.f32 %v544, %v712
        %v745 = vadd.f32 %v615, %v713
        %v746 = vadd.f32 %v617, %v714
        %v747 = vmul.f32 %v715, 0.7978846
        %v748 = vmul.f32 %v716, 0.7978846
        %v749 = vmul.f32 %v717, 0.7978846
        %v750 = vmul.f32 %v718, 0.7978846
        %v751 = vmul.f32 %v719, 0.7978846
        %v752 = vmul.f32 %v720, 0.7978846
        %v753 = vmul.f32 %v721, 0.7978846
        %v754 = vmul.f32 %v722, 0.7978846
        %v755 = vmul.f32 %v723, 0.7978846
        %v756 = vmul.f32 %v724, 0.7978846
        %v757 = vmul.f32 %v725, 0.7978846
        %v758 = vmul.f32 %v726, 0.7978846
        %v759 = vmul.f32 %v727, 0.7978846
        %v760 = vmul.f32 %v728, 0.7978846
        %v761 = vmul.f32 %v729, 0.7978846
        %v762 = vmul.f32 %v730, 0.7978846
        %v763 = vmul.f32 %v731, 0.7978846
        %v764 = vmul.f32 %v732, 0.7978846
        %v765 = vmul.f32 %v733, 0.7978846
        %v766 = vmul.f32 %v734, 0.7978846
        %v767 = vmul.f32 %v735, 0.7978846
        %v768 = vmul.f32 %v736, 0.7978846
        %v769 = vmul.f32 %v737, 0.7978846
        %v770 = vmul.f32 %v738, 0.7978846
        %v771 = vmul.f32 %v739, 0.7978846
        %v772 = vmul.f32 %v740, 0.7978846
        %v773 = vmul.f32 %v741, 0.7978846
        %v774 = vmul.f32 %v742, 0.7978846
        %v775 = vmul.f32 %v743, 0.7978846
        %v776 = vmul.f32 %v744, 0.7978846
        %v777 = vmul.f32 %v745, 0.7978846
        %v778 = vmul.f32 %v746, 0.7978846
        %v779 = vtanh.pop %v747
        %v780 = vtanh.pop %v748
        %v781 = vtanh.pop %v749
        %v782 = vtanh.pop %v750
        %v783 = vtanh.pop %v751
        %v784 = vtanh.pop %v752
        %v785 = vtanh.pop %v753
        %v786 = vtanh.pop %v754
        %v787 = vtanh.pop %v755
        %v788 = vtanh.pop %v756
        %v789 = vtanh.pop %v757
        %v790 = vtanh.pop %v758
        %v791 = vtanh.pop %v759
        %v792 = vtanh.pop %v760
        %v793 = vtanh.pop %v761
        %v794 = vtanh.pop %v762
        %v795 = vtanh.pop %v763
        %v796 = vtanh.pop %v764
        %v797 = vtanh.pop %v765
        %v798 = vtanh.pop %v766
        %v799 = vtanh.pop %v767
        %v800 = vtanh.pop %v768
        %v801 = vtanh.pop %v769
        %v802 = vtanh.pop %v770
        %v803 = vtanh.pop %v771
        %v804 = vtanh.pop %v772
        %v805 = vtanh.pop %v773
        %v806 = vtanh.pop %v774
        %v807 = vtanh.pop %v775
        %v808 = vtanh.pop %v776
        %v809 = vtanh.pop %v777
        %v810 = vtanh.pop %v778
        %v811 = vadd.f32 %v779, 1.0
        %v812 = vadd.f32 %v780, 1.0
        %v813 = vadd.f32 %v781, 1.0
        %v814 = vadd.f32 %v782, 1.0
        %v815 = vadd.f32 %v783, 1.0
        %v816 = vadd.f32 %v784, 1.0
        %v817 = vadd.f32 %v785, 1.0
        %v818 = vadd.f32 %v786, 1.0
        %v819 = vadd.f32 %v787, 1.0
        %v820 = vadd.f32 %v788, 1.0
        %v821 = vadd.f32 %v789, 1.0
        %v822 = vadd.f32 %v790, 1.0
        %v823 = vadd.f32 %v791, 1.0
        %v824 = vadd.f32 %v792, 1.0
        %v825 = vadd.f32 %v793, 1.0
        %v826 = vadd.f32 %v794, 1.0
        %v827 = vadd.f32 %v795, 1.0
        %v828 = vadd.f32 %v796, 1.0
        %v829 = vadd.f32 %v797, 1.0
        %v830 = vadd.f32 %v798, 1.0
        %v831 = vadd.f32 %v799, 1.0
        %v832 = vadd.f32 %v800, 1.0
        %v833 = vadd.f32 %v801, 1.0
        %v834 = vadd.f32 %v802, 1.0
        %v835 = vadd.f32 %v803, 1.0
        %v836 = vadd.f32 %v804, 1.0
        %v837 = vadd.f32 %v805, 1.0
        %v838 = vadd.f32 %v806, 1.0
        %v839 = vadd.f32 %v807, 1.0
        %v840 = vadd.f32 %v808, 1.0
        %v841 = vadd.f32 %v809, 1.0
        %v842 = vadd.f32 %v810, 1.0
        %v843 = vmul.f32 %v811, 0.5
        %v844 = vmul.f32 %v812, 0.5
        %v845 = vmul.f32 %v813, 0.5
        %v846 = vmul.f32 %v814, 0.5
        %v847 = vmul.f32 %v815, 0.5
        %v848 = vmul.f32 %v816, 0.5
        %v849 = vmul.f32 %v817, 0.5
        %v850 = vmul.f32 %v818, 0.5
        %v851 = vmul.f32 %v819, 0.5
        %v852 = vmul.f32 %v820, 0.5
        %v853 = vmul.f32 %v821, 0.5
        %v854 = vmul.f32 %v822, 0.5
        %v855 = vmul.f32 %v823, 0.5
        %v856 = vmul.f32 %v824, 0.5
        %v857 = vmul.f32 %v825, 0.5
        %v858 = vmul.f32 %v826, 0.5
        %v859 = vmul.f32 %v827, 0.5
        %v860 = vmul.f32 %v828, 0.5
        %v861 = vmul.f32 %v829, 0.5
        %v862 = vmul.f32 %v830, 0.5
        %v863 = vmul.f32 %v831, 0.5
        %v864 = vmul.f32 %v832, 0.5
        %v865 = vmul.f32 %v833, 0.5
        %v866 = vmul.f32 %v834, 0.5
        %v867 = vmul.f32 %v835, 0.5
        %v868 = vmul.f32 %v836, 0.5
        %v869 = vmul.f32 %v837, 0.5
        %v870 = vmul.f32 %v838, 0.5
        %v871 = vmul.f32 %v839, 0.5
        %v872 = vmul.f32 %v840, 0.5
        %v873 = vmul.f32 %v841, 0.5
        %v874 = vmul.f32 %v842, 0.5
        %v875 = vmul.f32 %v508, %v843
        %v876 = vmul.f32 %v510, %v844
        %v877 = vmul.f32 %v581, %v845
        %v878 = vmul.f32 %v583, %v846
        %v879 = vmul.f32 %v512, %v847
        %v880 = vmul.f32 %v514, %v848
        %v881 = vmul.f32 %v585, %v849
        %v882 = vmul.f32 %v587, %v850
        %v883 = vmul.f32 %v518, %v851
        %v884 = vmul.f32 %v520, %v852
        %v885 = vmul.f32 %v591, %v853
        %v886 = vmul.f32 %v593, %v854
        %v887 = vmul.f32 %v522, %v855
        %v888 = vmul.f32 %v524, %v856
        %v889 = vmul.f32 %v595, %v857
        %v890 = vmul.f32 %v597, %v858
        %v891 = vmul.f32 %v528, %v859
        %v892 = vmul.f32 %v530, %v860
        %v893 = vmul.f32 %v601, %v861
        %v894 = vmul.f32 %v603, %v862
        %v895 = vmul.f32 %v532, %v863
        %v896 = vmul.f32 %v534, %v864
        %v897 = vmul.f32 %v605, %v865
        %v898 = vmul.f32 %v607, %v866
        %v899 = vmul.f32 %v538, %v867
        %v900 = vmul.f32 %v540, %v868
        %v901 = vmul.f32 %v611, %v869
        %v902 = vmul.f32 %v613, %v870
        %v903 = vmul.f32 %v542, %v871
        %v904 = vmul.f32 %v544, %v872
        %v905 = vmul.f32 %v615, %v873
        %v906 = vmul.f32 %v617, %v874
        %v907 = vpack.c.bf16 %v879, %v875
        %v908 = vpack.c.bf16 %v880, %v876
        %v909 = vpack.c.bf16 %v881, %v877
        %v910 = vpack.c.bf16 %v882, %v878
        %v911 = vpack.c.bf16 %v887, %v883
        %v912 = vpack.c.bf16 %v888, %v884
        %v913 = vpack.c.bf16 %v889, %v885
        %v914 = vpack.c.bf16 %v890, %v886
        %v915 = vpack.c.bf16 %v895, %v891
        %v916 = vpack.c.bf16 %v896, %v892
        %v917 = vpack.c.bf16 %v897, %v893
        %v918 = vpack.c.bf16 %v898, %v894
        %v919 = vpack.c.bf16 %v903, %v899
        %v920 = vpack.c.bf16 %v904, %v900
        %v921 = vpack.c.bf16 %v905, %v901
        %v922 = vpack.c.bf16 %v906, %v902
        %v923 = vld [vmem:[%s3] sm:$0xf]
        %v924 = vld [vmem:[%s3 + $0x4] sm:$0xf]
        %v925 = vld [vmem:[%s3 + $0x8] sm:$0xf]
        %v926 = vld [vmem:[%s3 + $0xc] sm:$0xf]
        %v927 = vld [vmem:[%s3 + $0x10] sm:$0xf]
        %v928 = vld [vmem:[%s3 + $0x14] sm:$0xf]
        %v929 = vld [vmem:[%s3 + $0x18] sm:$0xf]
        %v930 = vld [vmem:[%s3 + $0x1c] sm:$0xf]
        %v931 = vld [vmem:[%s3 + $0x20] sm:$0xf]
        %v932 = vld [vmem:[%s3 + $0x24] sm:$0xf]
        %v933 = vld [vmem:[%s3 + $0x28] sm:$0xf]
        %v934 = vld [vmem:[%s3 + $0x2c] sm:$0xf]
        %v935 = vld [vmem:[%s3 + $0x30] sm:$0xf]
        %v936 = vld [vmem:[%s3 + $0x34] sm:$0xf]
        %v937 = vld [vmem:[%s3 + $0x38] sm:$0xf]
        %v938 = vld [vmem:[%s3 + $0x3c] sm:$0xf]
        %v939 = vld [vmem:[%s3 + $0x40] sm:$0xf]
        %v940 = vld [vmem:[%s3 + $0x44] sm:$0xf]
        %v941 = vld [vmem:[%s3 + $0x48] sm:$0xf]
        %v942 = vld [vmem:[%s3 + $0x4c] sm:$0xf]
        %v943 = vld [vmem:[%s3 + $0x50] sm:$0xf]
        %v944 = vld [vmem:[%s3 + $0x54] sm:$0xf]
        %v945 = vld [vmem:[%s3 + $0x58] sm:$0xf]
        %v946 = vld [vmem:[%s3 + $0x5c] sm:$0xf]
        %v947 = vld [vmem:[%s3 + $0x60] sm:$0xf]
        %v948 = vld [vmem:[%s3 + $0x64] sm:$0xf]
        %v949 = vld [vmem:[%s3 + $0x68] sm:$0xf]
        %v950 = vld [vmem:[%s3 + $0x6c] sm:$0xf]
        %v951 = vld [vmem:[%s3 + $0x70] sm:$0xf]
        %v952 = vld [vmem:[%s3 + $0x74] sm:$0xf]
        %v953 = vld [vmem:[%s3 + $0x78] sm:$0xf]
        %v954 = vld [vmem:[%s3 + $0x7c] sm:$0xf]
        %v955 = vld [vmem:[%s3 + $0x80] sm:$0xf]
        %v956 = vld [vmem:[%s3 + $0x84] sm:$0xf]
        %v957 = vld [vmem:[%s3 + $0x88] sm:$0xf]
        %v958 = vld [vmem:[%s3 + $0x8c] sm:$0xf]
        %v959 = vld [vmem:[%s3 + $0x90] sm:$0xf]
        %v960 = vld [vmem:[%s3 + $0x94] sm:$0xf]
        %v961 = vld [vmem:[%s3 + $0x98] sm:$0xf]
        %v962 = vld [vmem:[%s3 + $0x9c] sm:$0xf]
        %v963 = vld [vmem:[%s3 + $0xa0] sm:$0xf]
        %v964 = vld [vmem:[%s3 + $0xa4] sm:$0xf]
        %v965 = vld [vmem:[%s3 + $0xa8] sm:$0xf]
        %v966 = vld [vmem:[%s3 + $0xac] sm:$0xf]
        %v967 = vld [vmem:[%s3 + $0xb0] sm:$0xf]
        %v968 = vld [vmem:[%s3 + $0xb4] sm:$0xf]
        %v969 = vld [vmem:[%s3 + $0xb8] sm:$0xf]
        %v970 = vld [vmem:[%s3 + $0xbc] sm:$0xf]
        %v971 = vld [vmem:[%s3 + $0xc0] sm:$0xf]
        %v972 = vld [vmem:[%s3 + $0xc4] sm:$0xf]
        %v973 = vld [vmem:[%s3 + $0xc8] sm:$0xf]
        %v974 = vld [vmem:[%s3 + $0xcc] sm:$0xf]
        %v975 = vld [vmem:[%s3 + $0xd0] sm:$0xf]
        %v976 = vld [vmem:[%s3 + $0xd4] sm:$0xf]
        %v977 = vld [vmem:[%s3 + $0xd8] sm:$0xf]
        %v978 = vld [vmem:[%s3 + $0xdc] sm:$0xf]
        %v979 = vld [vmem:[%s3 + $0xe0] sm:$0xf]
        %v980 = vld [vmem:[%s3 + $0xe4] sm:$0xf]
        %v981 = vld [vmem:[%s3 + $0xe8] sm:$0xf]
        %v982 = vld [vmem:[%s3 + $0xec] sm:$0xf]
        %v983 = vld [vmem:[%s3 + $0xf0] sm:$0xf]
        %v984 = vld [vmem:[%s3 + $0xf4] sm:$0xf]
        %v985 = vld [vmem:[%s3 + $0xf8] sm:$0xf]
        %v986 = vld [vmem:[%s3 + $0xfc] sm:$0xf]
        %v987 = vld [vmem:[%s4] sm:$0x1]
        %v989 = vlaneseq
        %v990 = vshrl.u32 %v989, 7
        %v991 = vsub.s32 0, %v990
        %v992 = vrot.slane %v987, %v991
        %v1058 = vunpack.c.l.b16 %v923
        %v1059 = vunpack.c.l.b16 %v924
        %v1060 = vunpack.c.l.b16 %v925
        %v1061 = vunpack.c.l.b16 %v926
        %v1062 = vunpack.c.l.b16 %v927
        %v1063 = vunpack.c.l.b16 %v928
        %v1064 = vunpack.c.l.b16 %v929
        %v1065 = vunpack.c.l.b16 %v930
        %v1066 = vunpack.c.l.b16 %v931
        %v1067 = vunpack.c.l.b16 %v932
        %v1068 = vunpack.c.l.b16 %v933
        %v1069 = vunpack.c.l.b16 %v934
        %v1070 = vunpack.c.l.b16 %v935
        %v1071 = vunpack.c.l.b16 %v936
        %v1072 = vunpack.c.l.b16 %v937
        %v1073 = vunpack.c.l.b16 %v938
        %v1074 = vunpack.c.l.b16 %v939
        %v1075 = vunpack.c.l.b16 %v940
        %v1076 = vunpack.c.l.b16 %v941
        %v1077 = vunpack.c.l.b16 %v942
        %v1078 = vunpack.c.l.b16 %v943
        %v1079 = vunpack.c.l.b16 %v944
        %v1080 = vunpack.c.l.b16 %v945
        %v1081 = vunpack.c.l.b16 %v946
        %v1082 = vunpack.c.l.b16 %v947
        %v1083 = vunpack.c.l.b16 %v948
        %v1084 = vunpack.c.l.b16 %v949
        %v1085 = vunpack.c.l.b16 %v950
        %v1086 = vunpack.c.l.b16 %v951
        %v1087 = vunpack.c.l.b16 %v952
        %v1088 = vunpack.c.l.b16 %v953
        %v1089 = vunpack.c.l.b16 %v954
        %v1090 = vunpack.c.l.b16 %v955
        %v1091 = vunpack.c.l.b16 %v956
        %v1092 = vunpack.c.l.b16 %v957
        %v1093 = vunpack.c.l.b16 %v958
        %v1094 = vunpack.c.l.b16 %v959
        %v1095 = vunpack.c.l.b16 %v960
        %v1096 = vunpack.c.l.b16 %v961
        %v1097 = vunpack.c.l.b16 %v962
        %v1098 = vunpack.c.l.b16 %v963
        %v1099 = vunpack.c.l.b16 %v964
        %v1100 = vunpack.c.l.b16 %v965
        %v1101 = vunpack.c.l.b16 %v966
        %v1102 = vunpack.c.l.b16 %v967
        %v1103 = vunpack.c.l.b16 %v968
        %v1104 = vunpack.c.l.b16 %v969
        %v1105 = vunpack.c.l.b16 %v970
        %v1106 = vunpack.c.l.b16 %v971
        %v1107 = vunpack.c.l.b16 %v972
        %v1108 = vunpack.c.l.b16 %v973
        %v1109 = vunpack.c.l.b16 %v974
        %v1110 = vunpack.c.l.b16 %v975
        %v1111 = vunpack.c.l.b16 %v976
        %v1112 = vunpack.c.l.b16 %v977
        %v1113 = vunpack.c.l.b16 %v978
        %v1114 = vunpack.c.l.b16 %v979
        %v1115 = vunpack.c.l.b16 %v980
        %v1116 = vunpack.c.l.b16 %v981
        %v1117 = vunpack.c.l.b16 %v982
        %v1118 = vunpack.c.l.b16 %v983
        %v1119 = vunpack.c.l.b16 %v984
        %v1120 = vunpack.c.l.b16 %v985
        %v1121 = vunpack.c.l.b16 %v986
        %v1122 = vpack.c.b16 %v1059, %v1058
        %v1123 = vpack.c.b16 %v1061, %v1060
        %v1124 = vpack.c.b16 %v1063, %v1062
        %v1125 = vpack.c.b16 %v1065, %v1064
        %v1126 = vpack.c.b16 %v1067, %v1066
        %v1127 = vpack.c.b16 %v1069, %v1068
        %v1128 = vpack.c.b16 %v1071, %v1070
        %v1129 = vpack.c.b16 %v1073, %v1072
        %v1130 = vpack.c.b16 %v1075, %v1074
        %v1131 = vpack.c.b16 %v1077, %v1076
        %v1132 = vpack.c.b16 %v1079, %v1078
        %v1133 = vpack.c.b16 %v1081, %v1080
        %v1134 = vpack.c.b16 %v1083, %v1082
        %v1135 = vpack.c.b16 %v1085, %v1084
        %v1136 = vpack.c.b16 %v1087, %v1086
        %v1137 = vpack.c.b16 %v1089, %v1088
        %v1138 = vpack.c.b16 %v1091, %v1090
        %v1139 = vpack.c.b16 %v1093, %v1092
        %v1140 = vpack.c.b16 %v1095, %v1094
        %v1141 = vpack.c.b16 %v1097, %v1096
        %v1142 = vpack.c.b16 %v1099, %v1098
        %v1143 = vpack.c.b16 %v1101, %v1100
        %v1144 = vpack.c.b16 %v1103, %v1102
        %v1145 = vpack.c.b16 %v1105, %v1104
        %v1146 = vpack.c.b16 %v1107, %v1106
        %v1147 = vpack.c.b16 %v1109, %v1108
        %v1148 = vpack.c.b16 %v1111, %v1110
        %v1149 = vpack.c.b16 %v1113, %v1112
        %v1150 = vpack.c.b16 %v1115, %v1114
        %v1151 = vpack.c.b16 %v1117, %v1116
        %v1152 = vpack.c.b16 %v1119, %v1118
        %v1153 = vpack.c.b16 %v1121, %v1120
        %1186 = vmatprep.subr.bf16.mxu0 0
        %1187 = vmatpush1.bf16.msra.mxu0 %v1122
        %1188 = vmatprep.subr.bf16.mxu0 0
        %1189 = vmatpush1.bf16.msra.mxu0 %v1123
        %1190 = vmatprep.subr.bf16.mxu0 0
        %1191 = vmatpush1.bf16.msra.mxu0 %v1124
        %1192 = vmatprep.subr.bf16.mxu0 0
        %1193 = vmatpush1.bf16.msra.mxu0 %v1125
        %1194 = vmatprep.subr.bf16.mxu0 0
        %1195 = vmatpush1.bf16.msra.mxu0 %v1126
        %1196 = vmatprep.subr.bf16.mxu0 0
        %1197 = vmatpush1.bf16.msra.mxu0 %v1127
        %1198 = vmatprep.subr.bf16.mxu0 0
        %1199 = vmatpush1.bf16.msra.mxu0 %v1128
        %1200 = vmatprep.subr.bf16.mxu0 0
        %1201 = vmatpush1.bf16.msra.mxu0 %v1129
        %1202 = vmatprep.subr.bf16.mxu0 0
        %1203 = vmatpush1.bf16.msra.mxu0 %v1130
        %1204 = vmatprep.subr.bf16.mxu0 0
        %1205 = vmatpush1.bf16.msra.mxu0 %v1131
        %1206 = vmatprep.subr.bf16.mxu0 0
        %1207 = vmatpush1.bf16.msra.mxu0 %v1132
        %1208 = vmatprep.subr.bf16.mxu0 0
        %1209 = vmatpush1.bf16.msra.mxu0 %v1133
        %1210 = vmatprep.subr.bf16.mxu0 0
        %1211 = vmatpush1.bf16.msra.mxu0 %v1134
        %1212 = vmatprep.subr.bf16.mxu0 0
        %1213 = vmatpush1.bf16.msra.mxu0 %v1135
        %1214 = vmatprep.subr.bf16.mxu0 0
        %1215 = vmatpush1.bf16.msra.mxu0 %v1136
        %1216 = vmatprep.subr.bf16.mxu0 0
        %1217 = vmatpush1.bf16.msra.mxu0 %v1137
        %1218 = vmatprep.mubr.bf16.mxu0 %v908
        %1219 = vmatmul.mubr.bf16.gmra.mrb[0].mxu0 %v907
        %v1220 = vpop.f32.mrb[0].mxu0
        %v1221 = vadd.f32 %v992, %v1220
        %v1222 = vpop.f32.mrb[0].mxu0
        %v1223 = vpop.f32.mrb[0].mxu0
        %v1224 = vadd.f32 %v992, %v1223
        %v1225 = vpop.f32.mrb[0].mxu0
        %1226 = vmatprep.mubr.bf16.mxu0 %v912
        %1227 = vmatmul.mubr.bf16.gmra.mrb[0].mxu0 %v911
        %v1228 = vpop.f32.mrb[0].mxu0
        %v1229 = vadd.f32 %v992, %v1228
        %v1230 = vpop.f32.mrb[0].mxu0
        %v1231 = vpop.f32.mrb[0].mxu0
        %v1232 = vadd.f32 %v992, %v1231
        %v1233 = vpop.f32.mrb[0].mxu0
        %1234 = vmatprep.mubr.bf16.mxu0 %v916
        %1235 = vmatmul.mubr.bf16.gmra.mrb[0].mxu0 %v915
        %v1236 = vpop.f32.mrb[0].mxu0
        %v1237 = vadd.f32 %v992, %v1236
        %v1238 = vpop.f32.mrb[0].mxu0
        %v1239 = vpop.f32.mrb[0].mxu0
        %v1240 = vadd.f32 %v992, %v1239
        %v1241 = vpop.f32.mrb[0].mxu0
        %1242 = vmatprep.mubr.bf16.mxu0 %v920
        %1243 = vmatmul.mubr.bf16.gmra.mrb[0].mxu0 %v919
        %v1244 = vpop.f32.mrb[0].mxu0
        %v1245 = vadd.f32 %v992, %v1244
        %v1246 = vpop.f32.mrb[0].mxu0
        %v1247 = vpop.f32.mrb[0].mxu0
        %v1248 = vadd.f32 %v992, %v1247
        %v1249 = vpop.f32.mrb[0].mxu0
        %1250 = vdwg.mxu0
        %1251 = vmatprep.subr.bf16.mxu0 0
        %1252 = vmatpush1.bf16.msra.mxu0 %v1138
        %1253 = vmatprep.subr.bf16.mxu0 0
        %1254 = vmatpush1.bf16.msra.mxu0 %v1139
        %1255 = vmatprep.subr.bf16.mxu0 0
        %1256 = vmatpush1.bf16.msra.mxu0 %v1140
        %1257 = vmatprep.subr.bf16.mxu0 0
        %1258 = vmatpush1.bf16.msra.mxu0 %v1141
        %1259 = vmatprep.subr.bf16.mxu0 0
        %1260 = vmatpush1.bf16.msra.mxu0 %v1142
        %1261 = vmatprep.subr.bf16.mxu0 0
        %1262 = vmatpush1.bf16.msra.mxu0 %v1143
        %1263 = vmatprep.subr.bf16.mxu0 0
        %1264 = vmatpush1.bf16.msra.mxu0 %v1144
        %1265 = vmatprep.subr.bf16.mxu0 0
        %1266 = vmatpush1.bf16.msra.mxu0 %v1145
        %1267 = vmatprep.subr.bf16.mxu0 0
        %1268 = vmatpush1.bf16.msra.mxu0 %v1146
        %1269 = vmatprep.subr.bf16.mxu0 0
        %1270 = vmatpush1.bf16.msra.mxu0 %v1147
        %1271 = vmatprep.subr.bf16.mxu0 0
        %1272 = vmatpush1.bf16.msra.mxu0 %v1148
        %1273 = vmatprep.subr.bf16.mxu0 0
        %1274 = vmatpush1.bf16.msra.mxu0 %v1149
        %1275 = vmatprep.subr.bf16.mxu0 0
        %1276 = vmatpush1.bf16.msra.mxu0 %v1150
        %1277 = vmatprep.subr.bf16.mxu0 0
        %1278 = vmatpush1.bf16.msra.mxu0 %v1151
        %1279 = vmatprep.subr.bf16.mxu0 0
        %1280 = vmatpush1.bf16.msra.mxu0 %v1152
        %1281 = vmatprep.subr.bf16.mxu0 0
        %1282 = vmatpush1.bf16.msra.mxu0 %v1153
        %1283 = vmatprep.mubr.bf16.mxu0 %v910
        %1284 = vmatmul.mubr.bf16.gmra.mrb[0].mxu0 %v909
        %v1285 = vpop.f32.mrb[0].mxu0
        %v1286 = vadd.f32 %v1221, %v1285
        %v1287 = vpop.f32.mrb[0].mxu0
        %v1288 = vpop.f32.mrb[0].mxu0
        %v1289 = vadd.f32 %v1224, %v1288
        %v1290 = vpop.f32.mrb[0].mxu0
        %1291 = vmatprep.mubr.bf16.mxu0 %v914
        %1292 = vmatmul.mubr.bf16.gmra.mrb[0].mxu0 %v913
        %v1293 = vpop.f32.mrb[0].mxu0
        %v1294 = vadd.f32 %v1229, %v1293
        %v1295 = vpop.f32.mrb[0].mxu0
        %v1296 = vpop.f32.mrb[0].mxu0
        %v1297 = vadd.f32 %v1232, %v1296
        %v1298 = vpop.f32.mrb[0].mxu0
        %1299 = vmatprep.mubr.bf16.mxu0 %v918
        %1300 = vmatmul.mubr.bf16.gmra.mrb[0].mxu0 %v917
        %v1301 = vpop.f32.mrb[0].mxu0
        %v1302 = vadd.f32 %v1237, %v1301
        %v1303 = vpop.f32.mrb[0].mxu0
        %v1304 = vpop.f32.mrb[0].mxu0
        %v1305 = vadd.f32 %v1240, %v1304
        %v1306 = vpop.f32.mrb[0].mxu0
        %1307 = vmatprep.mubr.bf16.mxu0 %v922
        %1308 = vmatmul.mubr.bf16.gmra.mrb[0].mxu0 %v921
        %v1309 = vpop.f32.mrb[0].mxu0
        %v1310 = vadd.f32 %v1245, %v1309
        %v1311 = vpop.f32.mrb[0].mxu0
        %v1312 = vpop.f32.mrb[0].mxu0
        %v1313 = vadd.f32 %v1248, %v1312
        %v1314 = vpop.f32.mrb[0].mxu0
        %1315 = vdwg.mxu0
        %1316 = vst [vmem:[%s218] sm:$0xff] %v1286
        %1317 = vst [vmem:[%s218 + $0x8] sm:$0xff] %v1289
        %1318 = vst [vmem:[%s218 + $0x10] sm:$0xff] %v1294
        %1319 = vst [vmem:[%s218 + $0x18] sm:$0xff] %v1297
        %1320 = vst [vmem:[%s218 + $0x20] sm:$0xff] %v1302
        %1321 = vst [vmem:[%s218 + $0x28] sm:$0xff] %v1305
        %1322 = vst [vmem:[%s218 + $0x30] sm:$0xff] %v1310
        %1323 = vst [vmem:[%s218 + $0x38] sm:$0xff] %v1313
        %s1324 = sand.u32 %s137, 1
        %s1325 = scalar_lea.sflag [#allocation3], %s1324
        %s1326 = sand.u32 %s137, 1
        %s1327 = smul.addr %s1326, 64
        %s1328 = scalar_lea.vmem [#allocation2], %s1327
        // Predicated region
        $region41: #{_mlp_forward_impl.1} parent=39 // pred_check
          %p1329 = pneg %p147
        $region42: #{_mlp_forward_impl.1} parent=39 // pred_check_branch
          %1331 = sbr.rel (%p1329) target = $region44
        $region43: #{_mlp_forward_impl.1} parent=39 // pred_region
          %s1332 = smul.u32 8, %s19
          %s1334 = ssub.s32 1024, 1024
          %1335 = vsyncadd %s1325, %s1334
          %s1336 = smul.addr %s1332, 128
          %s1337 = scalar_lea.hbm %s5, %s1336
          %s1338 = sshll.u32 %s1328, 4
          %s1339 = int_to_ptr.vmem [resolvable:$true] %s1338
          %1344 = dma.vmem_to_hbm [thread:$0]  %s1339, 1024, %s1337, %s1325, 128, 128, 8
        $region44: #{_mlp_forward_impl.1} parent=39 // pred_fallthru
          _
      $region40: #{_mlp_forward_impl.1} parent=5 // pred_fallthru
        _
      %p1345 = scmp.le.s32.totalorder 2, %s14
      // Predicated region
      $region45: #{_mlp_forward_impl.1} parent=5 // pred_check
        %p1346 = pneg %p1345
      $region46: #{_mlp_forward_impl.1} parent=5 // pred_check_branch
        %1348 = sbr.rel (%p1346) target = $region48
      $region47: #{_mlp_forward_impl.1} parent=5 // pred_region
        %s1349 = ssub.s32 %s14, 2
        // Predicated region
        $region49: #{_mlp_forward_impl.1} parent=47 // pred_check
          %p1350 = pneg %p153
        $region50: #{_mlp_forward_impl.1} parent=47 // pred_check_branch
          %1352 = sbr.rel (%p1350) target = $region52
        $region51: #{_mlp_forward_impl.1} parent=47 // pred_region
          %s1353 = sand.u32 %s138, 1
          %s1354 = scalar_lea.sflag [#allocation3], %s1353
          %s1355 = sand.u32 %s138, 1
          %s1356 = smul.addr %s1355, 64
          %s1357 = scalar_lea.vmem [#allocation2], %s1356
          %1358 = dma.done %s1354, 1024
        $region52: #{_mlp_forward_impl.1} parent=47 // pred_fallthru
          _
      $region48: #{_mlp_forward_impl.1} parent=5 // pred_fallthru
        _
    $region6: #{_mlp_forward_impl.1} parent=1 // loop_footer
      %s18 = sadd.s32 1, %s14
    $region7: #{_mlp_forward_impl.1} parent=1 // loop_footer_branch
      %13 = sbr.rel target = $region3
    $region8: #{_mlp_forward_impl.1} parent=1 // loop_exit
      _
    %1359 = vsyncpa [#allocation3], 1
    %s1360 = scalar_lea.sflag [#allocation3], 1
    %1361 = vsyncpa %s1360, 1

</llo_original>
